<compile_context>
chip_gen: v6e
topology: v6e:2x2x1
jax: 0.10.0
libtpu: 0.0.40
codegen_flags: <defaults>
</compile_context>

<pallas_src>
import functools

import jax
import jax.numpy as jnp
from jax.experimental import pallas as pl
from jax.experimental.pallas import tpu as pltpu

_LANE_CANDIDATES = (1024, 512, 256, 128)   # lane-dense last dims (mult of 128)
_TARGET_BLOCK_BYTES = 2 * 1024 * 1024      # ~2 MiB per buffer per grid step


def _actlog_kernel(x_ref, o_ref, *, eps):
    x = x_ref[...]
    # clamp(x, min=eps) then log  (VPU max + EUP log, hidden under DMA)
    o_ref[...] = jnp.log(jnp.maximum(x, jnp.asarray(eps, dtype=x.dtype)))


def _select_block_rows(rows, lane, itemsize):
    """Pick rows per block: ~2 MiB per buffer, multiple of 8 (or full extent),
    and keep the grid >= 2 for non-trivial slabs so v7x's 2nd TC has work."""
    max_by_target = max(8, ((_TARGET_BLOCK_BYTES // (lane * itemsize)) // 8) * 8)
    if rows > max_by_target:
        return max_by_target
    if rows >= 16:
        # Split roughly in half, rounded up to a multiple of 8 -> grid of 2.
        half = -(-rows // 2)
        return -(-half // 8) * 8
    # Tiny input: single block covering the full extent (legal even if rows
    # is not a multiple of 8, since the block equals the full array dims).
    return rows


def act_log(x, eps=1e-6, donate_input=False):
    """Pallas implementation of ActLog.forward: log(clamp(x, min=eps))."""
    orig_shape = x.shape
    dtype = x.dtype
    n = x.size
    itemsize = jnp.dtype(dtype).itemsize

    # Pick a lane width that divides n exactly -> no pad/slice HBM round trip.
    lane = None
    for cand in _LANE_CANDIDATES:
        if n % cand == 0:
            lane = cand
            break

    if lane is not None:
        rows = n // lane
        x2d = x.reshape(rows, lane)
        padded = False
    else:
        # Rare fallback: n not a multiple of 128. Pad with 1.0 (log stays
        # finite), slice off below.
        lane = 128
        rows = pl.cdiv(n, lane)
        pad = rows * lane - n
        flat = jnp.concatenate([x.reshape(-1), jnp.ones((pad,), dtype=dtype)])
        x2d = flat.reshape(rows, lane)
        padded = True

    block_rows = _select_block_rows(rows, lane, itemsize)
    grid = (pl.cdiv(rows, block_rows),)

    call_kwargs = {}
    if donate_input and not padded:
        # Same shape/dtype -> output can reuse the input's HBM buffer.
        call_kwargs["input_output_aliases"] = {0: 0}

    out = pl.pallas_call(
        functools.partial(_actlog_kernel, eps=eps),
        out_shape=jax.ShapeDtypeStruct((rows, lane), dtype),
        grid=grid,
        in_specs=[pl.BlockSpec((block_rows, lane), lambda i: (i, 0))],
        out_specs=pl.BlockSpec((block_rows, lane), lambda i: (i, 0)),
        compiler_params=pltpu.CompilerParams(
            dimension_semantics=("parallel",)),
        cost_estimate=pl.CostEstimate(
            flops=n, transcendentals=n, bytes_accessed=2 * n * itemsize),
        **call_kwargs,
    )(x2d)

    if padded:
        return out.reshape(-1)[:n].reshape(orig_shape)
    return out.reshape(orig_shape)


if __name__ == "__main__":
    eps = 1e-6

    # Small NCHW input consistent with an activation inside ShallowConvNet.
    x = jax.random.normal(jax.random.PRNGKey(0), (2, 4, 16, 16), dtype=jnp.float32)
    y = jax.block_until_ready(act_log(x, eps=eps))
    y_ref = jnp.log(jnp.maximum(x, eps))
    assert y.shape == x.shape
    assert jnp.allclose(y, y_ref, atol=1e-6, rtol=1e-6), "mismatch (small)"

    # Larger input: exercises the multi-block (grid > 1) streaming path.
    x2 = jax.random.normal(jax.random.PRNGKey(1), (8, 16, 64, 64), dtype=jnp.float32)
    y2 = jax.block_until_ready(act_log(x2, eps=eps))
    y2_ref = jnp.log(jnp.maximum(x2, eps))
    assert y2.shape == x2.shape
    assert jnp.allclose(y2, y2_ref, atol=1e-6, rtol=1e-6), "mismatch (tiled)"

    # Ragged path: rows not a multiple of block_rows (partial last block).
    x3 = jax.random.normal(jax.random.PRNGKey(2), (20, 32, 32), dtype=jnp.float32)
    y3 = jax.block_until_ready(act_log(x3, eps=eps))
    y3_ref = jnp.log(jnp.maximum(x3, eps))
    assert y3.shape == x3.shape
    assert jnp.allclose(y3, y3_ref, atol=1e-6, rtol=1e-6), "mismatch (ragged)"

    # Fallback path: size not divisible by 128 (pad + slice).
    x4 = jax.random.normal(jax.random.PRNGKey(3), (3, 5, 7, 11), dtype=jnp.float32)
    y4 = jax.block_until_ready(act_log(x4, eps=eps))
    y4_ref = jnp.log(jnp.maximum(x4, eps))
    assert y4.shape == x4.shape
    assert jnp.allclose(y4, y4_ref, atol=1e-6, rtol=1e-6), "mismatch (pad fallback)"

    print("KERNEL_OK")
</pallas_src>

<mosaic_0001>
module attributes {stable_mosaic.version = 11 : i64} {
  func.func @_actlog_kernel(%arg0: i32, %arg1: memref<2x1024xf32, #tpu.memory_space<vmem>>, %arg2: memref<2x1024xf32, #tpu.memory_space<vmem>>) attributes {dimension_semantics = [#tpu.dimension_semantics<parallel>], iteration_bounds = array<i64: 1>, scalar_prefetch = 0 : i64, scratch_operands = 0 : i64, tpu.core_type = #tpu.core_type<tc>, window_params = [{transform_indices = @transform_0, window_bounds = array<i64: 2, 1024>}, {transform_indices = @transform_1, window_bounds = array<i64: 2, 1024>}]} {
    %c0 = arith.constant 0 : index
    %c0_0 = arith.constant 0 : index
    %0 = vector.load %arg1[%c0, %c0_0] : memref<2x1024xf32, #tpu.memory_space<vmem>>, vector<2x1024xf32>
    %cst = arith.constant 9.99999997E-7 : f32
    %1 = vector.broadcast %cst : f32 to vector<2x1024xf32>
    %2 = arith.maximumf %0, %1 : vector<2x1024xf32>
    %3 = math.log %2 : vector<2x1024xf32>
    %c0_1 = arith.constant 0 : index
    %c0_2 = arith.constant 0 : index
    %4 = vector.load %arg2[%c0_1, %c0_2] : memref<2x1024xf32, #tpu.memory_space<vmem>>, vector<2x1024xf32>
    tpu.vector_store %arg2[%c0_1, %c0_2], %3 {strides = array<i32>} : memref<2x1024xf32, #tpu.memory_space<vmem>>, vector<2x1024xf32>,
    return
  }
  func.func @transform_0(%arg0: i32) -> (i32, i32) {
    %c0_i32 = arith.constant 0 : i32
    %c0_i32_0 = arith.constant 0 : i32
    return %arg0, %c0_i32 : i32, i32
  }
  func.func @transform_1(%arg0: i32) -> (i32, i32) {
    %c0_i32 = arith.constant 0 : i32
    %c0_i32_0 = arith.constant 0 : i32
    return %arg0, %c0_i32 : i32, i32
  }
}

</mosaic_0001>

<llo_original>
// kernel: tpu_custom_call.1
$region0: #{tpu_custom_call.1}
  #allocation0 [shape = 'u32[]', space=smem, size = 0x4, offset = 0x4, fixed_abs, tag = 'smem constant byte address 0x4 - core index']
  #allocation1 [shape = 'u32[144,128]{1,0:T(1,128)}', space=vmem, size = 0x12000, scoped, tag = 'internal scratch']
  %s0 = inlined_call_operand.hbm [shape: f32[2,1024], index: 0, kind: input, shape index: {}]
  %s1 = inlined_call_operand.hbm [shape: f32[2,1024], index: 1, kind: output, shape index: {}]
  %s2 = sld [smem:[#allocation0]]
  $region18: #{tpu_custom_call.1} parent=0
    _
  %s4 = ssub.s32 1, %s2
  %s5 = scalar_select 0, %s4, %s2
  $region1: #{tpu_custom_call.1} parent=0
    #allocation2 [shape = 'u8[8192]{0}', space=vmem, size = 0x2000, scoped, tag = 'input window, operand 0, single buffered']
    #allocation3 [shape = 's32[1]{0}', space=sflag, size = 0x4, scoped, tag = 'scoped memory for tpu_custom_call.1']
    #allocation4 [shape = 's32[1]{0}', space=sflag, size = 0x4, scoped, tag = 'scoped memory for tpu_custom_call.1']
    #allocation5 [shape = 'u8[8192]{0}', space=vmem, size = 0x2000, scoped, tag = 'output window, operand 0, single buffered']
    %6 = vsyncpa [#allocation3], 0
    %7 = vsyncpa [#allocation4], 0
    // Predicated region
    $region2: #{tpu_custom_call.1} parent=1 // pred_check
      _
    $region3: #{tpu_custom_call.1} parent=1 // pred_check_branch
      %9 = sbr.rel (0) target = $region5
    $region4: #{tpu_custom_call.1} parent=1 // pred_region
      %s11 = ssub.s32 256, 256
      %12 = vsyncadd [#allocation3], %s11
      %s14 = sshll.u32 [#allocation2], 4
      %s15 = int_to_ptr.vmem [resolvable:$true] %s14
      %17 = dma.hbm_to_vmem [thread:$0]  %s0, 256, %s15, [#allocation3]
    $region5: #{tpu_custom_call.1} parent=1 // pred_fallthru
      _
    // Predicated region
    $region6: #{tpu_custom_call.1} parent=1 // pred_check
      _
    $region7: #{tpu_custom_call.1} parent=1 // pred_check_branch
      %19 = sbr.rel (0) target = $region9
    $region8: #{tpu_custom_call.1} parent=1 // pred_region
      %20 = dma.done [#allocation3], 256
    $region9: #{tpu_custom_call.1} parent=1 // pred_fallthru
      _
    %v21 = vld [vmem:[#allocation2] sm:$0xff]
    %v22 = vld [vmem:[#allocation2 + $0x8] sm:$0xff]
    %v23 = vmax.f32 %v21, 1e-06
    %v24 = vmax.f32 %v22, 1e-06
    %v25 = vlog2.pop %v23
    %v26 = vmul.f32 %v25, 0.6931472
    %v27 = vlog2.pop %v24
    %v28 = vmul.f32 %v27, 0.6931472
    %29 = vst [vmem:[#allocation5] sm:$0xff] %v26
    %30 = vst [vmem:[#allocation5 + $0x8] sm:$0xff] %v28
    // Predicated region
    $region10: #{tpu_custom_call.1} parent=1 // pred_check
      _
    $region11: #{tpu_custom_call.1} parent=1 // pred_check_branch
      %32 = sbr.rel (0) target = $region13
    $region12: #{tpu_custom_call.1} parent=1 // pred_region
      %s34 = ssub.s32 256, 256
      %35 = vsyncadd [#allocation4], %s34
      %s37 = sshll.u32 [#allocation5], 4
      %s38 = int_to_ptr.vmem [resolvable:$true] %s37
      %40 = dma.vmem_to_hbm [thread:$0]  %s38, 256, %s1, [#allocation4]
    $region13: #{tpu_custom_call.1} parent=1 // pred_fallthru
      _
    // Predicated region
    $region14: #{tpu_custom_call.1} parent=1 // pred_check
      _
    $region15: #{tpu_custom_call.1} parent=1 // pred_check_branch
      %42 = sbr.rel (0) target = $region17
    $region16: #{tpu_custom_call.1} parent=1 // pred_region
      %43 = dma.done [#allocation4], 256
    $region17: #{tpu_custom_call.1} parent=1 // pred_fallthru
      _
    %44 = vsyncpa [#allocation3], 1
    %45 = vsyncpa [#allocation4], 1

</llo_original>
